<compile_context>
chip_gen: v5e
topology: v5e:2x2
jax: 0.10.0
libtpu: 0.0.40
codegen_flags: <defaults>
</compile_context>

<pallas_src>
import functools

import jax
import jax.numpy as jnp
from jax import lax
from jax.experimental import pallas as pl
from jax.experimental.pallas import tpu as pltpu


# ----------------------------- Pallas kernel --------------------------------

def _encoded_y_kernel(inv_temp_ref,   # SMEM (1,)                 f32 : 1/temperature
                      mask_ref,       # VMEM (T, BS)              f32 : event mask
                      hs_ref,         # VMEM (T+1, BS, H)         f32 : augmented hidden seq
                      packed_ref,     # VMEM (H+3+y_dim, D1)      f32 : [w1; b1; gamma; beta; w_logit^T]
                      noise_ref,      # VMEM (Ny, BS, y_dim)      f32 : Gumbel(0,1) noise
                      out_ref):       # VMEM ((1+Ny)*BS, y_dim)   f32 : [norm_logits ; samples]
    T, BS = mask_ref.shape
    Tp1, _, H = hs_ref.shape
    Ny, _, y_dim = noise_ref.shape

    # --- fused argmax(mask, dim=0): first index of the per-column maximum ----
    # (matches torch/jnp argmax tie-breaking; all-zero columns give index 0)
    mask = mask_ref[...]
    maxv = jnp.max(mask, axis=0, keepdims=True)                       # (1, BS)
    tio = lax.broadcasted_iota(jnp.int32, (T, BS), 0)
    idx = jnp.min(jnp.where(mask == maxv, tio, T), axis=0,
                  keepdims=True)                                      # (1, BS)

    # --- one-hot gather of hidden_seq[1:][idx[b], b, :]  ->  x (BS, H) -------
    # The +1 folds the "drop the prepended h'" slice into the select, so the
    # whole (T+1, BS, H) buffer is read once and reduced on the VPU/XLU.
    tio_full = lax.broadcasted_iota(jnp.int32, (Tp1, BS), 0)
    onehot = (tio_full == (idx + 1)).astype(jnp.float32)              # (T+1, BS)
    x = jnp.sum(onehot[:, :, None] * hs_ref[...], axis=0)             # (BS, H)

    # --- parameter rows from the single packed buffer ------------------------
    w1 = packed_ref[pl.ds(0, H), :]                                   # (H, D1)
    b1 = packed_ref[pl.ds(H, 1), :]                                   # (1, D1)
    gamma = packed_ref[pl.ds(H + 1, 1), :]                            # (1, D1)
    beta = packed_ref[pl.ds(H + 2, 1), :]                             # (1, D1)
    wlT = packed_ref[pl.ds(H + 3, y_dim), :]                          # (y_dim, D1)

    # --- MLP layer: Linear + LayerNorm(eps=1e-5, biased var) + ReLU ----------
    z = jnp.dot(x, w1, preferred_element_type=jnp.float32) + b1       # (BS, D1)
    mu = jnp.mean(z, axis=-1, keepdims=True)
    var = jnp.mean((z - mu) ** 2, axis=-1, keepdims=True)
    zn = (z - mu) * lax.rsqrt(var + 1e-5) * gamma + beta
    a = jnp.maximum(zn, 0.0)

    # --- logit module: Linear without bias (w_logit stored transposed) -------
    raw = lax.dot_general(a, wlT, (((1,), (1,)), ((), ())),
                          preferred_element_type=jnp.float32)         # (BS, y_dim)

    # torch.distributions.Categorical normalizes: logits - logsumexp(logits)
    m = jnp.max(raw, axis=-1, keepdims=True)
    lse = m + jnp.log(jnp.sum(jnp.exp(raw - m), axis=-1, keepdims=True))
    norm_logits = raw - lse
    out_ref[pl.ds(0, BS), :] = norm_logits

    # --- Gumbel-softmax: softmax((g + logits) * inv_temp, dim=-1) ------------
    inv_temp = inv_temp_ref[0]
    h2 = (noise_ref[...] + norm_logits[None, :, :]) * inv_temp        # (Ny, BS, y_dim)
    hmax = jnp.max(h2, axis=-1, keepdims=True)
    e = jnp.exp(h2 - hmax)
    y = e / jnp.sum(e, axis=-1, keepdims=True)        # exact divide: rows sum to 1
    for n in range(Ny):                               # Ny static & tiny: unrolled stores,
        out_ref[pl.ds((n + 1) * BS, BS), :] = y[n]    # avoids an in-kernel reshape


# ------------------------------ host wrapper ---------------------------------

def encoded_y_pallas(augmented_hidden_seq, mask, packed_y, gumbel_noise, temp):
    """Single fused pallas_call.

    augmented_hidden_seq: (T+1, BS, H) f32; mask: (T, BS); packed_y: (H+3+y_dim, D1);
    gumbel_noise: (Ny, BS, y_dim).
    Returns a ((1+Ny)*BS, y_dim) block: rows [0:BS] = normalized logits,
    rows [BS:] = the Ny*BS Gumbel-softmax samples.
    """
    _, BS, _ = augmented_hidden_seq.shape
    Ny, _, y_dim = gumbel_noise.shape

    inv_temp_arr = jnp.asarray([1.0 / temp], dtype=jnp.float32)

    vmem = functools.partial(pl.BlockSpec, memory_space=pltpu.MemorySpace.VMEM)
    smem = functools.partial(pl.BlockSpec, memory_space=pltpu.MemorySpace.SMEM)

    return pl.pallas_call(
        _encoded_y_kernel,
        out_shape=jax.ShapeDtypeStruct(((1 + Ny) * BS, y_dim), jnp.float32),
        in_specs=[smem(), vmem(), vmem(), vmem(), vmem()],
        out_specs=vmem(),
    )(inv_temp_arr,
      mask.astype(jnp.float32),
      augmented_hidden_seq.astype(jnp.float32),
      packed_y,
      gumbel_noise)


# ------------------------- BaseEncoder (JAX side) ----------------------------

def init_base_encoder_params(key, y_dims, rnn_dims, z_dims):
    """Deterministic synthetic parameter init matching BaseEncoder.__init__ shapes."""
    ks = jax.random.split(key, 8)
    H, D1 = y_dims[0], y_dims[1]
    params = {
        # y_module = MLPCategorical([H, D1, y_dim])
        "w1": 0.1 * jax.random.normal(ks[0], (H, D1), jnp.float32),
        "b1": 0.1 * jax.random.normal(ks[1], (1, D1), jnp.float32),
        "gamma": jnp.ones((1, D1), jnp.float32),
        "beta": jnp.zeros((1, D1), jnp.float32),
        "w_logit": 0.1 * jax.random.normal(ks[2], (D1, y_dims[-1]), jnp.float32),
    }
    # Pack once at init: [w1; b1; gamma; beta; w_logit^T] -> one VMEM input DMA.
    params["packed_y"] = jnp.concatenate(
        [params["w1"], params["b1"], params["gamma"], params["beta"],
         params["w_logit"].T], axis=0)

    # TODO(synk): BaseEncoder.forward is NotImplementedError upstream; the GRU
    #             (rnn_module) and MLPNormal (z_module) created in __init__ are
    #             not exercised by _get_encoded_y, so they are only kept here
    #             for shape fidelity and never run.
    Hr = rnn_dims[1]
    params["_unused_gru"] = {
        "w_ih": 0.1 * jax.random.normal(ks[3], (3 * Hr, rnn_dims[0]), jnp.float32),
        "w_hh": 0.1 * jax.random.normal(ks[4], (3 * Hr, Hr), jnp.float32),
    }
    params["_unused_z"] = {
        "w1": 0.1 * jax.random.normal(ks[5], (z_dims[0], z_dims[1]), jnp.float32),
        "w_mu": 0.1 * jax.random.normal(ks[6], (z_dims[1], z_dims[-1]), jnp.float32),
        "w_logvar": 0.1 * jax.random.normal(ks[7], (z_dims[1], z_dims[-1]), jnp.float32),
    }
    return params


def get_encoded_y(params, augmented_hidden_seq, mask, temp, Ny, key):
    """JAX/Pallas port of BaseEncoder._get_encoded_y.

    augmented_hidden_seq: (T+1, BS, H), mask: (T, BS)
    returns (logits (BS, y_dim), sample_y (Ny, T, BS, y_dim))
    """
    T, BS = mask.shape
    y_dim = params["w_logit"].shape[1]

    # Gumbel(0,1) noise (== torch Gumbel(0,1).rsample). Generated host-side so a
    # fresh key per call gives independent posterior samples (per review), and
    # so the kernel has no dependence on the hardware PRNG.
    g = jax.random.gumbel(key, (Ny, BS, y_dim), jnp.float32)

    out = encoded_y_pallas(augmented_hidden_seq, mask, params["packed_y"], g, temp)
    logits = out[:BS]                                    # (BS, y_dim) normalized
    sample = out[BS:].reshape(Ny, BS, y_dim)
    # unsqueeze(1).expand(Ny, T, -1, -1): kept as a lazy broadcast (no compute)
    sample_y = jnp.broadcast_to(sample[:, None, :, :], (Ny, T, BS, y_dim))
    return logits, sample_y


# ----------------------------- reference (pure JAX) ---------------------------

def _ref_encoded_y(last_hidden, params, gumbel_noise, temp):
    z = last_hidden @ params["w1"] + params["b1"]
    mu = z.mean(-1, keepdims=True)
    var = ((z - mu) ** 2).mean(-1, keepdims=True)
    zn = (z - mu) / jnp.sqrt(var + 1e-5) * params["gamma"] + params["beta"]
    a = jnp.maximum(zn, 0.0)
    logits = a @ params["w_logit"]
    norm_logits = logits - jax.scipy.special.logsumexp(logits, axis=-1, keepdims=True)
    y = jax.nn.softmax((gumbel_noise + norm_logits[None]) / temp, axis=-1)
    return norm_logits, y


# ---------------------------------- main --------------------------------------

if __name__ == "__main__":
    # Small shapes consistent with the module:
    T, BS, H = 8, 4, 32          # rnn_hidden_dim = 32
    y_dims = [H, 32, 8]          # y_dim = 8
    rnn_dims = [16, H]
    z_dims = [H + y_dims[-1], 32, 16]
    Ny = 3                       # num_posterior_samples
    temp = 0.66

    key = jax.random.PRNGKey(0)
    k_param, k_h, k_mask, k_noise = jax.random.split(key, 4)

    params = init_base_encoder_params(k_param, y_dims, rnn_dims, z_dims)

    augmented_hidden_seq = jax.random.normal(k_h, (T + 1, BS, H), jnp.float32)
    mask = (jax.random.uniform(k_mask, (T, BS)) > 0.3).astype(jnp.float32)

    logits, sample_y = get_encoded_y(params, augmented_hidden_seq, mask, temp, Ny,
                                     k_noise)
    jax.block_until_ready((logits, sample_y))

    # ---- correctness check vs pure-JAX reference (same noise key) ----
    hidden_seq = augmented_hidden_seq[1:]
    last_idx = jnp.argmax(mask, axis=0)
    last_hidden = hidden_seq[last_idx, jnp.arange(BS)]
    gnoise = jax.random.gumbel(k_noise, (Ny, BS, y_dims[-1]), jnp.float32)

    ref_logits, ref_sample = _ref_encoded_y(last_hidden, params, gnoise, temp)
    ref_sample_y = jnp.broadcast_to(ref_sample[:, None], (Ny, T, BS, y_dims[-1]))

    assert logits.shape == (BS, y_dims[-1])
    assert sample_y.shape == (Ny, T, BS, y_dims[-1])
    assert jnp.allclose(logits, ref_logits, atol=1e-5, rtol=1e-5)
    assert jnp.allclose(sample_y, ref_sample_y, atol=1e-5, rtol=1e-5)
    assert jnp.allclose(sample_y.sum(-1), 1.0, atol=1e-5)

    print("KERNEL_OK")
</pallas_src>

<mosaic_0001>
module attributes {stable_mosaic.version = 11 : i64} {
  func.func @_encoded_y_kernel(%arg0: memref<1xf32, #tpu.memory_space<smem>>, %arg1: memref<8x4xf32, #tpu.memory_space<vmem>>, %arg2: memref<9x4x32xf32, #tpu.memory_space<vmem>>, %arg3: memref<43x32xf32, #tpu.memory_space<vmem>>, %arg4: memref<3x4x8xf32, #tpu.memory_space<vmem>>, %arg5: memref<16x8xf32, #tpu.memory_space<vmem>>) attributes {dimension_semantics = [], scalar_prefetch = 0 : i64, scratch_operands = 0 : i64, tpu.core_type = #tpu.core_type<tc>} {
    %c0 = arith.constant 0 : index
    %c0_0 = arith.constant 0 : index
    %0 = vector.load %arg1[%c0, %c0_0] : memref<8x4xf32, #tpu.memory_space<vmem>>, vector<8x4xf32>
    %cst = arith.constant dense<0xFF800000> : vector<4xf32>
    %1 = vector.multi_reduction <maximumf>, %0, %cst [0] : vector<8x4xf32> to vector<4xf32>
    %2 = vector.shape_cast %1 : vector<4xf32> to vector<1x4xf32>
    %3 = tpu.iota {dimensions = array<i32: 0>} : vector<8x4xi32>
    %4 = vector.broadcast %2 : vector<1x4xf32> to vector<8x4xf32>
    %5 = arith.cmpf oeq, %0, %4 : vector<8x4xf32>
    %c8_i32 = arith.constant 8 : i32
    %6 = vector.broadcast %c8_i32 : i32 to vector<8x4xi32>
    %7 = arith.select %5, %3, %6 : vector<8x4xi1>, vector<8x4xi32>
    %cst_1 = arith.constant dense<2147483647> : vector<4xi32>
    %8 = vector.multi_reduction <minsi>, %7, %cst_1 [0] : vector<8x4xi32> to vector<4xi32>
    %9 = vector.shape_cast %8 : vector<4xi32> to vector<1x4xi32>
    %10 = tpu.iota {dimensions = array<i32: 0>} : vector<9x4xi32>
    %c1_i32 = arith.constant 1 : i32
    %11 = vector.broadcast %c1_i32 : i32 to vector<1x4xi32>
    %12 = arith.addi %9, %11 : vector<1x4xi32>
    %13 = vector.broadcast %12 : vector<1x4xi32> to vector<9x4xi32>
    %14 = arith.cmpi eq, %10, %13 : vector<9x4xi32>
    %15 = arith.extui %14 : vector<9x4xi1> to vector<9x4xi32>
    %16 = arith.sitofp %15 : vector<9x4xi32> to vector<9x4xf32>
    %17 = vector.shape_cast %16 : vector<9x4xf32> to vector<9x4x1xf32>
    %c0_2 = arith.constant 0 : index
    %c0_3 = arith.constant 0 : index
    %c0_4 = arith.constant 0 : index
    %18 = vector.load %arg2[%c0_2, %c0_3, %c0_4] : memref<9x4x32xf32, #tpu.memory_space<vmem>>, vector<9x4x32xf32>
    %19 = vector.broadcast %17 : vector<9x4x1xf32> to vector<9x4x32xf32>
    %20 = arith.mulf %19, %18 : vector<9x4x32xf32>
    %cst_5 = arith.constant dense<0.000000e+00> : vector<4x32xf32>
    %21 = vector.multi_reduction <add>, %20, %cst_5 [0] : vector<9x4x32xf32> to vector<4x32xf32>
    %c0_6 = arith.constant 0 : index
    %c0_7 = arith.constant 0 : index
    %22 = vector.load %arg3[%c0_6, %c0_7] : memref<43x32xf32, #tpu.memory_space<vmem>>, vector<32x32xf32>
    %c32 = arith.constant 32 : index
    %c0_8 = arith.constant 0 : index
    %23 = vector.load %arg3[%c32, %c0_8] : memref<43x32xf32, #tpu.memory_space<vmem>>, vector<1x32xf32>
    %c33 = arith.constant 33 : index
    %c0_9 = arith.constant 0 : index
    %24 = vector.load %arg3[%c33, %c0_9] : memref<43x32xf32, #tpu.memory_space<vmem>>, vector<1x32xf32>
    %c34 = arith.constant 34 : index
    %c0_10 = arith.constant 0 : index
    %25 = vector.load %arg3[%c34, %c0_10] : memref<43x32xf32, #tpu.memory_space<vmem>>, vector<1x32xf32>
    %c35 = arith.constant 35 : index
    %c0_11 = arith.constant 0 : index
    %26 = vector.load %arg3[%c35, %c0_11] : memref<43x32xf32, #tpu.memory_space<vmem>>, vector<8x32xf32>
    %cst_12 = arith.constant dense<0.000000e+00> : vector<4x32xf32>
    %27 = tpu.matmul %21, %22, %cst_12 {dimension_numbers = #tpu.dot_dimension_numbers<[1], [0], [0], [1], [0, 0, 1, 1], [], []>} : vector<4x32xf32>, vector<32x32xf32>, vector<4x32xf32> -> vector<4x32xf32>
    %28 = vector.broadcast %23 : vector<1x32xf32> to vector<4x32xf32>
    %29 = arith.addf %27, %28 : vector<4x32xf32>
    %cst_13 = arith.constant dense<0.000000e+00> : vector<4xf32>
    %30 = vector.multi_reduction <add>, %29, %cst_13 [1] : vector<4x32xf32> to vector<4xf32>
    %31 = vector.shape_cast %30 : vector<4xf32> to vector<4x1xf32>
    %cst_14 = arith.constant 3.200000e+01 : f32
    %32 = vector.broadcast %cst_14 : f32 to vector<4x1xf32>
    %33 = arith.divf %31, %32 : vector<4x1xf32>
    %34 = vector.broadcast %33 : vector<4x1xf32> to vector<4x32xf32>
    %35 = arith.subf %29, %34 : vector<4x32xf32>
    %36 = arith.mulf %35, %35 : vector<4x32xf32>
    %cst_15 = arith.constant dense<0.000000e+00> : vector<4xf32>
    %37 = vector.multi_reduction <add>, %36, %cst_15 [1] : vector<4x32xf32> to vector<4xf32>
    %38 = vector.shape_cast %37 : vector<4xf32> to vector<4x1xf32>
    %cst_16 = arith.constant 3.200000e+01 : f32
    %39 = vector.broadcast %cst_16 : f32 to vector<4x1xf32>
    %40 = arith.divf %38, %39 : vector<4x1xf32>
    %41 = vector.broadcast %33 : vector<4x1xf32> to vector<4x32xf32>
    %42 = arith.subf %29, %41 : vector<4x32xf32>
    %cst_17 = arith.constant 9.99999974E-6 : f32
    %43 = vector.broadcast %cst_17 : f32 to vector<4x1xf32>
    %44 = arith.addf %40, %43 : vector<4x1xf32>
    %45 = math.rsqrt %44 : vector<4x1xf32>
    %46 = vector.broadcast %45 : vector<4x1xf32> to vector<4x32xf32>
    %47 = arith.mulf %42, %46 : vector<4x32xf32>
    %48 = vector.broadcast %24 : vector<1x32xf32> to vector<4x32xf32>
    %49 = arith.mulf %47, %48 : vector<4x32xf32>
    %50 = vector.broadcast %25 : vector<1x32xf32> to vector<4x32xf32>
    %51 = arith.addf %49, %50 : vector<4x32xf32>
    %cst_18 = arith.constant 0.000000e+00 : f32
    %52 = vector.broadcast %cst_18 : f32 to vector<4x32xf32>
    %53 = arith.maximumf %51, %52 : vector<4x32xf32>
    %cst_19 = arith.constant dense<0.000000e+00> : vector<4x8xf32>
    %54 = tpu.matmul %53, %26, %cst_19 {dimension_numbers = #tpu.dot_dimension_numbers<[1], [1], [0], [0], [0, 0, 1, 0], [], []>} : vector<4x32xf32>, vector<8x32xf32>, vector<4x8xf32> -> vector<4x8xf32>
    %cst_20 = arith.constant dense<0xFF800000> : vector<4xf32>
    %55 = vector.multi_reduction <maximumf>, %54, %cst_20 [1] : vector<4x8xf32> to vector<4xf32>
    %56 = vector.shape_cast %55 : vector<4xf32> to vector<4x1xf32>
    %57 = vector.broadcast %56 : vector<4x1xf32> to vector<4x8xf32>
    %58 = arith.subf %54, %57 : vector<4x8xf32>
    %59 = math.exp %58 : vector<4x8xf32>
    %cst_21 = arith.constant dense<0.000000e+00> : vector<4xf32>
    %60 = vector.multi_reduction <add>, %59, %cst_21 [1] : vector<4x8xf32> to vector<4xf32>
    %61 = vector.shape_cast %60 : vector<4xf32> to vector<4x1xf32>
    %62 = math.log %61 : vector<4x1xf32>
    %63 = arith.addf %56, %62 : vector<4x1xf32>
    %64 = vector.broadcast %63 : vector<4x1xf32> to vector<4x8xf32>
    %65 = arith.subf %54, %64 : vector<4x8xf32>
    %c0_22 = arith.constant 0 : index
    %c0_23 = arith.constant 0 : index
    %66 = vector.load %arg5[%c0_22, %c0_23] : memref<16x8xf32, #tpu.memory_space<vmem>>, vector<4x8xf32>
    tpu.vector_store %arg5[%c0_22, %c0_23], %65 {strides = array<i32>} : memref<16x8xf32, #tpu.memory_space<vmem>>, vector<4x8xf32>,
    %c0_24 = arith.constant 0 : index
    %67 = memref.load %arg0[%c0_24] : memref<1xf32, #tpu.memory_space<smem>>
    %c0_25 = arith.constant 0 : index
    %c0_26 = arith.constant 0 : index
    %c0_27 = arith.constant 0 : index
    %68 = vector.load %arg4[%c0_25, %c0_26, %c0_27] : memref<3x4x8xf32, #tpu.memory_space<vmem>>, vector<3x4x8xf32>
    %69 = vector.shape_cast %65 : vector<4x8xf32> to vector<1x4x8xf32>
    %70 = vector.broadcast %69 : vector<1x4x8xf32> to vector<3x4x8xf32>
    %71 = arith.addf %68, %70 : vector<3x4x8xf32>
    %72 = vector.broadcast %67 : f32 to vector<3x4x8xf32>
    %73 = arith.mulf %71, %72 : vector<3x4x8xf32>
    %cst_28 = arith.constant dense<0xFF800000> : vector<3x4xf32>
    %74 = vector.multi_reduction <maximumf>, %73, %cst_28 [2] : vector<3x4x8xf32> to vector<3x4xf32>
    %75 = vector.shape_cast %74 : vector<3x4xf32> to vector<3x4x1xf32>
    %76 = vector.broadcast %75 : vector<3x4x1xf32> to vector<3x4x8xf32>
    %77 = arith.subf %73, %76 : vector<3x4x8xf32>
    %78 = math.exp %77 : vector<3x4x8xf32>
    %cst_29 = arith.constant dense<0.000000e+00> : vector<3x4xf32>
    %79 = vector.multi_reduction <add>, %78, %cst_29 [2] : vector<3x4x8xf32> to vector<3x4xf32>
    %80 = vector.shape_cast %79 : vector<3x4xf32> to vector<3x4x1xf32>
    %81 = vector.broadcast %80 : vector<3x4x1xf32> to vector<3x4x8xf32>
    %82 = arith.divf %78, %81 : vector<3x4x8xf32>
    %83 = vector.extract_strided_slice %82 {offsets = [0, 0, 0], sizes = [1, 4, 8], strides = [1, 1, 1]} : vector<3x4x8xf32> to vector<1x4x8xf32>
    %84 = vector.shape_cast %83 : vector<1x4x8xf32> to vector<4x8xf32>
    %c4 = arith.constant 4 : index
    %c0_30 = arith.constant 0 : index
    %85 = vector.load %arg5[%c4, %c0_30] : memref<16x8xf32, #tpu.memory_space<vmem>>, vector<4x8xf32>
    tpu.vector_store %arg5[%c4, %c0_30], %84 {strides = array<i32>} : memref<16x8xf32, #tpu.memory_space<vmem>>, vector<4x8xf32>,
    %86 = vector.extract_strided_slice %82 {offsets = [1, 0, 0], sizes = [1, 4, 8], strides = [1, 1, 1]} : vector<3x4x8xf32> to vector<1x4x8xf32>
    %87 = vector.shape_cast %86 : vector<1x4x8xf32> to vector<4x8xf32>
    %c8 = arith.constant 8 : index
    %c0_31 = arith.constant 0 : index
    %88 = vector.load %arg5[%c8, %c0_31] : memref<16x8xf32, #tpu.memory_space<vmem>>, vector<4x8xf32>
    tpu.vector_store %arg5[%c8, %c0_31], %87 {strides = array<i32>} : memref<16x8xf32, #tpu.memory_space<vmem>>, vector<4x8xf32>,
    %89 = vector.extract_strided_slice %82 {offsets = [2, 0, 0], sizes = [1, 4, 8], strides = [1, 1, 1]} : vector<3x4x8xf32> to vector<1x4x8xf32>
    %90 = vector.shape_cast %89 : vector<1x4x8xf32> to vector<4x8xf32>
    %c12 = arith.constant 12 : index
    %c0_32 = arith.constant 0 : index
    %91 = vector.load %arg5[%c12, %c0_32] : memref<16x8xf32, #tpu.memory_space<vmem>>, vector<4x8xf32>
    tpu.vector_store %arg5[%c12, %c0_32], %90 {strides = array<i32>} : memref<16x8xf32, #tpu.memory_space<vmem>>, vector<4x8xf32>,
    return
  }
}

</mosaic_0001>

<llo_original>
// kernel: tpu_custom_call.1
$region0: #{tpu_custom_call.1}
  #allocation0 [shape = 'u32[]', space=smem, size = 0x4, offset = 0x4, fixed_abs, tag = 'smem constant byte address 0x4 - core index']
  #allocation1 [shape = 'u32[72,128]{1,0:T(1,128)}', space=vmem, size = 0x9000, scoped, tag = 'internal scratch']
  #allocation2 [shape = 'f32[1]{0:T(128)S(6)}', space=smem, size = 0x200, scoped, tag = 'scoped memory for tpu_custom_call.1']
  %s0 = inlined_call_operand.<no memory space> [shape: f32[1], index: 0, kind: input, shape index: {}]
  %s1 = inlined_call_operand.vmem [shape: f32[8,4], index: 1, kind: input, shape index: {}]
  %s2 = inlined_call_operand.vmem [shape: f32[9,4,32], index: 2, kind: input, shape index: {}]
  %s3 = inlined_call_operand.vmem [shape: f32[43,32], index: 3, kind: input, shape index: {}]
  %s4 = inlined_call_operand.vmem [shape: f32[3,4,8], index: 4, kind: input, shape index: {}]
  %s5 = inlined_call_operand.vmem [shape: f32[16,8], index: 5, kind: output, shape index: {}]
  %s6 = sld [smem:[#allocation0]]
  $region30: #{tpu_custom_call.1} parent=0
    _
  %s8 = ssub.s32 1, %s6
  %s9 = scalar_select 0, %s8, %s6
  %10 = sst [smem:[#allocation2]] %s0
  // Predicated region
  $region2: #{tpu_custom_call.1} parent=0 // pred_check
    _
  $region3: #{tpu_custom_call.1} parent=0 // pred_check_branch
    %12 = sbr.rel (0) target = $region5
  $region4: #{tpu_custom_call.1} parent=0 // pred_region
    _
  $region5: #{tpu_custom_call.1} parent=0 // pred_fallthru
    _
  // Predicated region
  $region6: #{tpu_custom_call.1} parent=0 // pred_check
    _
  $region7: #{tpu_custom_call.1} parent=0 // pred_check_branch
    %14 = sbr.rel (0) target = $region9
  $region8: #{tpu_custom_call.1} parent=0 // pred_region
    _
  $region9: #{tpu_custom_call.1} parent=0 // pred_fallthru
    _
  // Predicated region
  $region10: #{tpu_custom_call.1} parent=0 // pred_check
    _
  $region11: #{tpu_custom_call.1} parent=0 // pred_check_branch
    %16 = sbr.rel (0) target = $region13
  $region12: #{tpu_custom_call.1} parent=0 // pred_region
    _
  $region13: #{tpu_custom_call.1} parent=0 // pred_fallthru
    _
  // Predicated region
  $region14: #{tpu_custom_call.1} parent=0 // pred_check
    _
  $region15: #{tpu_custom_call.1} parent=0 // pred_check_branch
    %18 = sbr.rel (0) target = $region17
  $region16: #{tpu_custom_call.1} parent=0 // pred_region
    _
  $region17: #{tpu_custom_call.1} parent=0 // pred_fallthru
    _
  // Predicated region
  $region18: #{tpu_custom_call.1} parent=0 // pred_check
    _
  $region19: #{tpu_custom_call.1} parent=0 // pred_check_branch
    %20 = sbr.rel (0) target = $region21
  $region20: #{tpu_custom_call.1} parent=0 // pred_region
    _
  $region21: #{tpu_custom_call.1} parent=0 // pred_fallthru
    _
  %v21 = vld [vmem:[%s1] sm:$0xff]
  %vm22 = vcmask 31744
  %v23 = vsel %vm22, %v21, -inf
  %v24 = vrot.slane %v23, 4
  %v25 = vmax.f32 %v23, %v24
  %v26 = vrot.slane %v25, 2
  %v27 = vmax.f32 %v25, %v26
  %v28 = vrot.slane %v27, 1
  %v29 = vmax.f32 %v27, %v28
  %v30 = vlaneseq
  %v31 = vshrl.u32 %v30, 7
  %vm32 = vcmp.eq.f32.partialorder %v21, %v29
  %v33 = vsel %vm32, %v31, 8
  %v34 = vsel %vm22, %v33, 2147483647
  %v35 = vrot.slane %v34, 4
  %vm36 = vcmp.lt.s32.totalorder %v34, %v35
  %v37 = vsel %vm36, %v34, %v35
  %v38 = vrot.slane %v37, 2
  %vm39 = vcmp.lt.s32.totalorder %v37, %v38
  %v40 = vsel %vm39, %v37, %v38
  %v41 = vrot.slane %v40, 1
  %vm42 = vcmp.lt.s32.totalorder %v40, %v41
  %v43 = vsel %vm42, %v40, %v41
  %v44 = vadd.s32 %v31, 8
  %v45 = vadd.s32 %v43, 1
  %vm46 = vcmp.eq.s32.totalorder %v31, %v45
  %vm47 = vcmp.eq.s32.totalorder %v44, %v45
  %v48 = vsel %vm46, 1, 0
  %v49 = vsel %vm47, 1, 0
  %v50 = vcvt.s32.f32 %v48
  %v51 = vcvt.s32.f32 %v49
  %v52 = vperm.slane %v50, 0
  %v53 = vlaneseq
  %v54 = vshrl.u32 %v53, 7
  %56 = vset.pattern.permute.xlu0 %v54
  %57 = vperm.xlu0 %56, %v52
  %v58 = vpop.permute.xlu0 %57
  %v59 = vperm.slane %v50, 1
  %v60 = vlaneseq
  %v61 = vshrl.u32 %v60, 7
  %63 = vset.pattern.permute.xlu0 %v61
  %64 = vperm.xlu0 %63, %v59
  %v65 = vpop.permute.xlu0 %64
  %v66 = vperm.slane %v50, 2
  %v67 = vlaneseq
  %v68 = vshrl.u32 %v67, 7
  %70 = vset.pattern.permute.xlu0 %v68
  %71 = vperm.xlu0 %70, %v66
  %v72 = vpop.permute.xlu0 %71
  %v73 = vperm.slane %v50, 3
  %v74 = vlaneseq
  %v75 = vshrl.u32 %v74, 7
  %77 = vset.pattern.permute.xlu0 %v75
  %78 = vperm.xlu0 %77, %v73
  %v79 = vpop.permute.xlu0 %78
  %v80 = vperm.slane %v50, 4
  %v81 = vlaneseq
  %v82 = vshrl.u32 %v81, 7
  %84 = vset.pattern.permute.xlu0 %v82
  %85 = vperm.xlu0 %84, %v80
  %v86 = vpop.permute.xlu0 %85
  %v87 = vperm.slane %v50, 5
  %v88 = vlaneseq
  %v89 = vshrl.u32 %v88, 7
  %91 = vset.pattern.permute.xlu0 %v89
  %92 = vperm.xlu0 %91, %v87
  %v93 = vpop.permute.xlu0 %92
  %v94 = vperm.slane %v50, 6
  %v95 = vlaneseq
  %v96 = vshrl.u32 %v95, 7
  %98 = vset.pattern.permute.xlu0 %v96
  %99 = vperm.xlu0 %98, %v94
  %v100 = vpop.permute.xlu0 %99
  %v101 = vperm.slane %v50, 7
  %v102 = vlaneseq
  %v103 = vshrl.u32 %v102, 7
  %105 = vset.pattern.permute.xlu0 %v103
  %106 = vperm.xlu0 %105, %v101
  %v107 = vpop.permute.xlu0 %106
  %v108 = vperm.slane %v51, 0
  %v109 = vlaneseq
  %v110 = vshrl.u32 %v109, 7
  %112 = vset.pattern.permute.xlu0 %v110
  %113 = vperm.xlu0 %112, %v108
  %v114 = vpop.permute.xlu0 %113
  %v115 = vld [vmem:[%s2] sm:$0xf]
  %v116 = vld [vmem:[%s2 + $0x4] sm:$0xf]
  %v117 = vld [vmem:[%s2 + $0x8] sm:$0xf]
  %v118 = vld [vmem:[%s2 + $0xc] sm:$0xf]
  %v119 = vld [vmem:[%s2 + $0x10] sm:$0xf]
  %v120 = vld [vmem:[%s2 + $0x14] sm:$0xf]
  %v121 = vld [vmem:[%s2 + $0x18] sm:$0xf]
  %v122 = vld [vmem:[%s2 + $0x1c] sm:$0xf]
  %v123 = vld [vmem:[%s2 + $0x20] sm:$0xf]
  %v124 = vmul.f32 %v58, %v115
  %v125 = vmul.f32 %v65, %v116
  %v126 = vmul.f32 %v72, %v117
  %v127 = vmul.f32 %v79, %v118
  %v128 = vmul.f32 %v86, %v119
  %v129 = vmul.f32 %v93, %v120
  %v130 = vmul.f32 %v100, %v121
  %v131 = vmul.f32 %v107, %v122
  %v132 = vmul.f32 %v114, %v123
  %vm133 = vcmask 257024
  %v134 = vsel %vm133, %v124, 0.0
  %v135 = vsel %vm133, %v125, 0.0
  %v136 = vadd.f32 %v134, %v135
  %v137 = vsel %vm133, %v126, 0.0
  %v138 = vadd.f32 %v136, %v137
  %v139 = vsel %vm133, %v127, 0.0
  %v140 = vadd.f32 %v138, %v139
  %v141 = vsel %vm133, %v128, 0.0
  %v142 = vadd.f32 %v140, %v141
  %v143 = vsel %vm133, %v129, 0.0
  %v144 = vadd.f32 %v142, %v143
  %v145 = vsel %vm133, %v130, 0.0
  %v146 = vadd.f32 %v144, %v145
  %v147 = vsel %vm133, %v131, 0.0
  %v148 = vadd.f32 %v146, %v147
  %v149 = vsel %vm133, %v132, 0.0
  %v150 = vadd.f32 %v148, %v149
  %v151 = vld [vmem:[%s3] sm:$0xff]
  %v152 = vld [vmem:[%s3 + $0x8] sm:$0xff]
  %v153 = vld [vmem:[%s3 + $0x10] sm:$0xff]
  %v154 = vld [vmem:[%s3 + $0x18] sm:$0xff]
  %v155 = vld [vmem:[%s3 + $0x20] sm:$0x1]
  %v156 = vld [vmem:[%s3 + $0x21] sm:$0x1]
  %v157 = vld [vmem:[%s3 + $0x22] sm:$0x1]
  %v158 = vld [vmem:[%s3 + $0x23] sm:$0xff]
  %v159 = vperm.slane %v155, 0
  %vm160 = vcmask 261120
  %v162 = vsel %vm160, %v150, 0
  %164 = vmatpush.msra.mxu0 0.0
  %165 = vmatpush.msra.mxu0 0.0
  %166 = vmatpush.msra.mxu0 0.0
  %167 = vmatpush.msra.mxu0 0.0
  %168 = vmatpush.msra.mxu0 0.0
  %169 = vmatpush.msra.mxu0 0.0
  %170 = vmatpush.msra.mxu0 0.0
  %171 = vmatpush.msra.mxu0 0.0
  %172 = vmatpush.msra.mxu0 0.0
  %173 = vmatpush.msra.mxu0 0.0
  %174 = vmatpush.msra.mxu0 0.0
  %175 = vmatpush.msra.mxu0 0.0
  %176 = vmatpush.msra.mxu0 %v154
  %177 = vmatpush.msra.mxu0 %v153
  %178 = vmatpush.msra.mxu0 %v152
  %179 = vmatpush.msra.mxu0 %v151
  %180 = vmatmul.f32.gmra.mxu0 %v162
  %v181 = vpop.f32.mrf.mxu0
  %v182 = vadd.f32 %v159, %v181
  %183 = vdwg.mxu0
  %v184 = vsel %vm133, %v182, 0.0
  %185 = vadd.xlane.f32.xlu0 %v184
  %v186 = vpop.xlane.xlu0 %185
  %v187 = vrcp.pop 32.0
  %v188 = vmul.f32 32.0, %v187
  %v189 = vsub.f32 1.0, %v188
  %v190 = vmul.f32 %v187, %v189
  %v191 = vadd.f32 %v187, %v190
  %vm192 = vweird.f32 %v187
  %v193 = vsel %vm192, %v187, %v191
  %v194 = vmul.f32 %v186, %v193
  %v195 = vsub.f32 %v182, %v194
  %v196 = vmul.f32 %v195, %v195
  %v197 = vsel %vm133, %v196, 0.0
  %198 = vadd.xlane.f32.xlu0 %v197
  %v199 = vpop.xlane.xlu0 %198
  %v200 = vmul.f32 %v199, %v193
  %v201 = vadd.f32 %v200, 1e-05
  %v202 = vrsqrt.pop %v201
  %v203 = vmul.f32 %v202, %v201
  %v204 = vmul.f32 %v203, %v202
  %v205 = vmul.f32 0.5, %v204
  %v206 = vsub.f32 1.5, %v205
  %v207 = vmul.f32 %v202, %v206
  %vm208 = vweird.f32 %v201
  %vm209 = vweird.f32 %v202
  %vm210 = vmor %vm208, %vm209
  %v211 = vsel %vm210, %v202, %v207
  %v212 = vmul.f32 %v195, %v211
  %v213 = vperm.slane %v156, 0
  %v214 = vmul.f32 %v212, %v213
  %v215 = vperm.slane %v157, 0
  %v216 = vadd.f32 %v214, %v215
  %v217 = vmax.f32 %v216, 0.0
  %v219 = vsel %vm160, %v217, 0
  %v222 = vsel %vm160, %v158, 0
  %224 = vmatpush.xpose.msra.mxu0 0.0
  %225 = vmatpush.xpose.msra.mxu0 0.0
  %226 = vmatpush.xpose.msra.mxu0 0.0
  %227 = vmatpush.xpose.msra.mxu0 0.0
  %228 = vmatpush.xpose.msra.mxu0 0.0
  %229 = vmatpush.xpose.msra.mxu0 0.0
  %230 = vmatpush.xpose.msra.mxu0 0.0
  %231 = vmatpush.xpose.msra.mxu0 0.0
  %232 = vmatpush.xpose.msra.mxu0 0.0
  %233 = vmatpush.xpose.msra.mxu0 0.0
  %234 = vmatpush.xpose.msra.mxu0 0.0
  %235 = vmatpush.xpose.msra.mxu0 0.0
  %236 = vmatpush.xpose.msra.mxu0 0.0
  %237 = vmatpush.xpose.msra.mxu0 0.0
  %238 = vmatpush.xpose.msra.mxu0 0.0
  %239 = vmatpush.xpose.msra.mxu0 %v222
  %240 = vmatmul.f32.gmra.mxu0 %v219
  %v241 = vpop.f32.mrf.mxu0
  %v242 = vadd.f32 0.0, %v241
  %243 = vdwg.mxu0
  %vm244 = vcmask 60416
  %v245 = vsel %vm244, %v242, -inf
  %246 = vmax.xlane.f32.xlu0 %v245
  %v247 = vpop.xlane.xlu0 %246
  %v248 = vsub.f32 %v242, %v247
  %v249 = vmul.f32 %v248, 1.442695
  %v250 = vpow.pop %v249
  %v251 = vsel %vm244, %v250, 0.0
  %252 = vadd.xlane.f32.xlu0 %v251
  %v253 = vpop.xlane.xlu0 %252
  %v254 = vlog2.pop %v253
  %v255 = vmul.f32 %v254, 0.6931472
  %v256 = vadd.f32 %v247, %v255
  %v257 = vsub.f32 %v242, %v256
  %258 = vst.msk [vmem:[%s5] sm:$0xf] %vm244, %v257
  %s259 = sld [smem:[#allocation2]]
  %v260 = vld [vmem:[%s4] sm:$0xf]
  %v261 = vld [vmem:[%s4 + $0x4] sm:$0xf]
  %v262 = vld [vmem:[%s4 + $0x8] sm:$0xf]
  %v263 = vadd.f32 %v260, %v257
  %v264 = vadd.f32 %v261, %v257
  %v265 = vadd.f32 %v262, %v257
  %v266 = vstv %s259
  %v267 = vmul.f32 %v263, %v266
  %v268 = vmul.f32 %v264, %v266
  %v269 = vmul.f32 %v265, %v266
  %v270 = vsel %vm244, %v267, -inf
  %271 = vmax.xlane.f32.xlu0 %v270
  %v272 = vpop.xlane.xlu0 %271
  %v273 = vsel %vm244, %v268, -inf
  %274 = vmax.xlane.f32.xlu0 %v273
  %v275 = vpop.xlane.xlu0 %274
  %v276 = vsel %vm244, %v269, -inf
  %277 = vmax.xlane.f32.xlu0 %v276
  %v278 = vpop.xlane.xlu0 %277
  %v279 = vsub.f32 %v267, %v272
  %v280 = vsub.f32 %v268, %v275
  %v281 = vsub.f32 %v269, %v278
  %v282 = vmul.f32 %v279, 1.442695
  %v283 = vpow.pop %v282
  %v284 = vmul.f32 %v280, 1.442695
  %v285 = vpow.pop %v284
  %v286 = vmul.f32 %v281, 1.442695
  %v287 = vpow.pop %v286
  %v288 = vsel %vm244, %v283, 0.0
  %289 = vadd.xlane.f32.xlu0 %v288
  %v290 = vpop.xlane.xlu0 %289
  %v291 = vsel %vm244, %v285, 0.0
  %292 = vadd.xlane.f32.xlu0 %v291
  %v293 = vpop.xlane.xlu0 %292
  %v294 = vsel %vm244, %v287, 0.0
  %295 = vadd.xlane.f32.xlu0 %v294
  %v296 = vpop.xlane.xlu0 %295
  %v297 = vrcp.pop %v290
  %v298 = vmul.f32 %v290, %v297
  %v299 = vsub.f32 1.0, %v298
  %v300 = vmul.f32 %v297, %v299
  %v301 = vadd.f32 %v297, %v300
  %vm302 = vweird.f32 %v290
  %vm303 = vweird.f32 %v297
  %vm304 = vmor %vm302, %vm303
  %v305 = vsel %vm304, %v297, %v301
  %v306 = vand.u32 2147483647, %v290
  %vm307 = vcmp.eq.f32.partialorder %v306, 8.507059e+37
  %v308 = vand.u32 %v290, 2147483648
  %v309 = vor.u32 1.1754944e-38, %v308
  %v310 = vsel %vm307, %v309, %v305
  %v311 = vmul.f32 %v283, %v310
  %v312 = vrcp.pop %v293
  %v313 = vmul.f32 %v293, %v312
  %v314 = vsub.f32 1.0, %v313
  %v315 = vmul.f32 %v312, %v314
  %v316 = vadd.f32 %v312, %v315
  %vm317 = vweird.f32 %v293
  %vm318 = vweird.f32 %v312
  %vm319 = vmor %vm317, %vm318
  %v320 = vsel %vm319, %v312, %v316
  %v321 = vand.u32 2147483647, %v293
  %vm322 = vcmp.eq.f32.partialorder %v321, 8.507059e+37
  %v323 = vand.u32 %v293, 2147483648
  %v324 = vor.u32 1.1754944e-38, %v323
  %v325 = vsel %vm322, %v324, %v320
  %v326 = vmul.f32 %v285, %v325
  %v327 = vrcp.pop %v296
  %v328 = vmul.f32 %v296, %v327
  %v329 = vsub.f32 1.0, %v328
  %v330 = vmul.f32 %v327, %v329
  %v331 = vadd.f32 %v327, %v330
  %vm332 = vweird.f32 %v296
  %vm333 = vweird.f32 %v327
  %vm334 = vmor %vm332, %vm333
  %v335 = vsel %vm334, %v327, %v331
  %v336 = vand.u32 2147483647, %v296
  %vm337 = vcmp.eq.f32.partialorder %v336, 8.507059e+37
  %v338 = vand.u32 %v296, 2147483648
  %v339 = vor.u32 1.1754944e-38, %v338
  %v340 = vsel %vm337, %v339, %v335
  %v341 = vmul.f32 %v287, %v340
  %342 = vst.msk [vmem:[%s5 + $0x4] sm:$0xf] %vm244, %v311
  %343 = vst.msk [vmem:[%s5 + $0x8] sm:$0xf] %vm244, %v326
  %344 = vst.msk [vmem:[%s5 + $0xc] sm:$0xf] %vm244, %v341
  // Predicated region
  $region22: #{tpu_custom_call.1} parent=0 // pred_check
    _
  $region23: #{tpu_custom_call.1} parent=0 // pred_check_branch
    %346 = sbr.rel (0) target = $region25
  $region24: #{tpu_custom_call.1} parent=0 // pred_region
    _
  $region25: #{tpu_custom_call.1} parent=0 // pred_fallthru
    _
  // Predicated region
  $region26: #{tpu_custom_call.1} parent=0 // pred_check
    _
  $region27: #{tpu_custom_call.1} parent=0 // pred_check_branch
    %348 = sbr.rel (0) target = $region29
  $region28: #{tpu_custom_call.1} parent=0 // pred_region
    _
  $region29: #{tpu_custom_call.1} parent=0 // pred_fallthru
    _

</llo_original>
